<compile_context>
chip_gen: v7x
topology: tpu7x:2x2x1
jax: 0.10.0
libtpu: 0.0.40
codegen_flags: <defaults>
</compile_context>

<pallas_src>
import functools

import jax
import jax.numpy as jnp
from jax.experimental import pallas as pl
from jax.experimental.pallas import tpu as pltpu

_LANE = 128
_SUBLANE = 8


def _round_up(x, m):
    return ((x + m - 1) // m) * m


def tokenizer_kernel(x_num_ref, ids_ref, table_ref, out_ref):
    """out = [x_num | multi_hot(ids) | 1] @ table  (bias folded into table)."""
    TB, Fn = x_num_ref.shape
    Fc = ids_ref.shape[1]
    K = table_ref.shape[0]          # Fn + V + 1
    V = K - Fn - 1

    # Multi-hot over global (offset-folded) ids; per-category id ranges are
    # disjoint, so the Fc one-hots sum into a single multi-hot row.
    iota = jax.lax.broadcasted_iota(jnp.int32, (TB, V), 1)
    mh = (iota == ids_ref[:, 0:1]).astype(jnp.float32)
    for c in range(1, Fc):
        mh = mh + (iota == ids_ref[:, c:c + 1]).astype(jnp.float32)

    ones = jnp.ones((TB, 1), jnp.float32)
    lhs = jnp.concatenate([x_num_ref[...], mh, ones], axis=1)      # (TB, K)

    # One matmul emits the lane-dense output slab directly (f32 accumulate).
    out_ref[...] = jnp.dot(
        lhs, table_ref[...], preferred_element_type=jnp.float32
    ).astype(out_ref.dtype)


def _build_table(weight, embeddings, bias, category_offsets):
    """Fused RHS (Fn+V+1, Ntok*D): block-diag weight, block-scattered
    embeddings (row r lands in its category's token slot), plus a bias row."""
    Fn, D = weight.shape
    V = embeddings.shape[0]
    Fc = category_offsets.shape[0]
    Ntok = Fn + Fc

    w = weight.astype(jnp.float32)
    e = embeddings.astype(jnp.float32)
    off = category_offsets.astype(jnp.int32)

    # Numerical: row f -> columns [f*D, (f+1)*D).
    t_num = (jnp.eye(Fn, dtype=jnp.float32)[:, :, None] * w[:, None, :])
    t_num = t_num.reshape(Fn, Fn * D)
    t_num = jnp.pad(t_num, ((0, 0), (0, Fc * D)))                  # (Fn, Ntok*D)

    # Categorical: global id r of category c -> columns [(Fn+c)*D, (Fn+c+1)*D).
    gid = jnp.arange(V, dtype=jnp.int32)
    cat_of = jnp.searchsorted(off, gid, side="right") - 1          # (V,)
    cat_oh = jax.nn.one_hot(cat_of, Fc, dtype=jnp.float32)         # (V, Fc)
    t_cat = (cat_oh[:, :, None] * e[:, None, :]).reshape(V, Fc * D)
    t_cat = jnp.pad(t_cat, ((0, 0), (Fn * D, 0)))                  # (V, Ntok*D)

    if bias is None:
        t_bias = jnp.zeros((1, Ntok * D), jnp.float32)
    else:
        t_bias = bias.astype(jnp.float32).reshape(1, Ntok * D)

    return jnp.concatenate([t_num, t_cat, t_bias], axis=0)         # (K, Ntok*D)


def _plan(B, Fn, Fc, V, D, out_itemsize):
    """Pick batch tile + vmem limit from the actual per-generation VMEM size."""
    Ntok = Fn + Fc
    row_w = Ntok * D
    K = Fn + V + 1

    try:
        cap = int(pltpu.get_tpu_info().vmem_capacity_bytes)
    except Exception:                      # conservative fallback (v7x-sized)
        cap = 64 * 1024 * 1024
    budget = int(cap * 0.7)                # headroom for compiler scratch

    # Resident fused table (counted double-buffered: constant index_map means
    # no re-DMA, but Pallas still allocates two buffers by default).
    t_bytes = _round_up(K, _SUBLANE) * _round_up(row_w, _LANE) * 4
    if 2 * t_bytes > budget // 2:
        # TODO(synk): scalar-prefetch row-DMA gather path for large tables.
        raise ValueError("fused weight/embedding table too large for the "
                         "VMEM-resident matmul-gather path")
    if V > 4096:
        raise ValueError("vocab too large for the multi-hot matmul gather")

    per_row = (2 * _round_up(row_w, _LANE) * out_itemsize   # out tile (dbl buf)
               + 2 * _round_up(Fn, _LANE) * 4               # x_num block
               + 2 * _round_up(Fc, _LANE) * 4               # ids block
               + _round_up(V, _LANE) * 4                    # multi-hot interm.
               + _round_up(K, _LANE) * 4)                   # lhs intermediate

    tb = (budget - 2 * t_bytes) // per_row
    if B <= _SUBLANE:
        tb = B                                   # full-dim block, grid of 1
    else:
        tb = max(_SUBLANE, min(tb, 4096, (B // _SUBLANE) * _SUBLANE))
        tb = (tb // _SUBLANE) * _SUBLANE
        # Keep >= 2 grid steps so ("parallel",) can feed both TCs on v7x.
        if tb >= B and B >= 2 * _SUBLANE:
            tb = max(_SUBLANE, ((B // 2) // _SUBLANE) * _SUBLANE)

    used = 2 * t_bytes + tb * per_row + (2 << 20)
    vmem_limit = int(min(int(cap * 0.9), max(2 * used, 32 * 1024 * 1024)))
    vmem_limit = max(vmem_limit, used)
    return tb, vmem_limit


@functools.partial(jax.jit, static_argnames=("out_dtype",))
def tokenizer_forward(x_num, x_cat, category_offsets, weight, embeddings,
                      bias=None, *, out_dtype=jnp.float32):
    B, Fn = x_num.shape
    Fc = x_cat.shape[1]
    V, D = embeddings.shape
    Ntok = Fn + Fc
    row_w = Ntok * D
    K = Fn + V + 1
    assert Fn >= 1 and Fc >= 1, "kernel expects numerical and categorical features"
    # TODO(synk): categories=None / x_num=None variants of the module are not
    # covered by this fused path (the reference module supports them).
    # NOTE: out-of-range category ids silently produce a bias-only token (the
    # multi-hot selects nothing) instead of raising like nn.Embedding.

    x_num = x_num.astype(jnp.float32)
    ids = x_cat.astype(jnp.int32) + category_offsets.astype(jnp.int32)[None, :]
    table = _build_table(weight, embeddings, bias, category_offsets)

    tb, vmem_limit = _plan(B, Fn, Fc, V, D, jnp.dtype(out_dtype).itemsize)

    out = pl.pallas_call(
        tokenizer_kernel,
        out_shape=jax.ShapeDtypeStruct((B, row_w), out_dtype),
        grid=(pl.cdiv(B, tb),),
        in_specs=[
            pl.BlockSpec((tb, Fn), lambda b: (b, 0)),        # x_num tile
            pl.BlockSpec((tb, Fc), lambda b: (b, 0)),        # ids tile
            pl.BlockSpec((K, row_w), lambda b: (0, 0)),      # resident fused T
        ],
        out_specs=pl.BlockSpec((tb, row_w), lambda b: (b, 0)),
        compiler_params=pltpu.CompilerParams(
            dimension_semantics=("parallel",),
            vmem_limit_bytes=vmem_limit),
    )(x_num, ids, table)

    return out.reshape(B, Ntok, D)


if __name__ == "__main__":
    # Small synthetic config consistent with the module's __init__.
    B = 16
    d_numerical = 6
    categories = (3, 4, 5)            # 3 categorical features
    d_token = 32
    Fc = len(categories)
    V = sum(categories)
    Ntok = d_numerical + Fc

    key = jax.random.PRNGKey(0)
    k_w, k_b, k_e, k_xn, k_xc = jax.random.split(key, 5)

    # Deterministic kaiming_uniform(a=sqrt(5))-style init: U(-1/sqrt(fan_in), +).
    bound = 1.0 / jnp.sqrt(jnp.float32(d_token))
    weight = jax.random.uniform(k_w, (d_numerical, d_token), jnp.float32,
                                -bound, bound)
    bias = jax.random.uniform(k_b, (Ntok, d_token), jnp.float32, -bound, bound)
    embeddings = jax.random.uniform(k_e, (V, d_token), jnp.float32,
                                    -bound, bound)
    category_offsets = jnp.cumsum(
        jnp.array((0,) + categories[:-1], dtype=jnp.int32))

    # Inputs.
    x_num = jax.random.normal(k_xn, (B, d_numerical), jnp.float32)
    x_cat = jnp.stack(
        [jax.random.randint(jax.random.fold_in(k_xc, i), (B,), 0,
                            categories[i], dtype=jnp.int32)
         for i in range(Fc)], axis=1)                      # (B, Fc)

    out = tokenizer_forward(x_num, x_cat, category_offsets, weight,
                            embeddings, bias)
    out = jax.block_until_ready(out)

    # Pure-JAX reference (mirrors the PyTorch forward exactly).
    ref_num = weight[None] * x_num[:, :, None]                     # (B,Fn,D)
    ref_cat = embeddings[x_cat + category_offsets[None]]           # (B,Fc,D)
    ref = jnp.concatenate([ref_num, ref_cat], axis=1) + bias[None]

    assert out.shape == (B, Ntok, d_token)
    assert jnp.allclose(out, ref, atol=1e-5, rtol=1e-5)
    print("KERNEL_OK")
</pallas_src>

<mosaic_0001>
module attributes {stable_mosaic.version = 11 : i64} {
  func.func @tokenizer_kernel(%arg0: i32, %arg1: memref<8x6xf32, #tpu.memory_space<vmem>>, %arg2: memref<8x3xi32, #tpu.memory_space<vmem>>, %arg3: memref<19x288xf32, #tpu.memory_space<vmem>>, %arg4: memref<8x288xf32, #tpu.memory_space<vmem>>) attributes {dimension_semantics = [#tpu.dimension_semantics<parallel>], iteration_bounds = array<i64: 2>, scalar_prefetch = 0 : i64, scratch_operands = 0 : i64, tpu.core_type = #tpu.core_type<tc>, window_params = [{transform_indices = @transform_0, window_bounds = array<i64: 8, 6>}, {transform_indices = @transform_1, window_bounds = array<i64: 8, 3>}, {pipeline_mode = #tpu.pipeline_mode<synchronous>, transform_indices = @transform_2, window_bounds = array<i64: 19, 288>}, {transform_indices = @transform_3, window_bounds = array<i64: 8, 288>}]} {
    %0 = tpu.iota {dimensions = array<i32: 1>} : vector<8x12xi32>
    %c0 = arith.constant 0 : index
    %c0_0 = arith.constant 0 : index
    %1 = vector.load %arg2[%c0, %c0_0] : memref<8x3xi32, #tpu.memory_space<vmem>>, vector<8x1xi32>
    %2 = vector.broadcast %1 : vector<8x1xi32> to vector<8x12xi32>
    %3 = arith.cmpi eq, %0, %2 : vector<8x12xi32>
    %4 = arith.extui %3 : vector<8x12xi1> to vector<8x12xi32>
    %5 = arith.sitofp %4 : vector<8x12xi32> to vector<8x12xf32>
    %c0_1 = arith.constant 0 : index
    %c1 = arith.constant 1 : index
    %6 = vector.load %arg2[%c0_1, %c1] : memref<8x3xi32, #tpu.memory_space<vmem>>, vector<8x1xi32>
    %7 = vector.broadcast %6 : vector<8x1xi32> to vector<8x12xi32>
    %8 = arith.cmpi eq, %0, %7 : vector<8x12xi32>
    %9 = arith.extui %8 : vector<8x12xi1> to vector<8x12xi32>
    %10 = arith.sitofp %9 : vector<8x12xi32> to vector<8x12xf32>
    %11 = arith.addf %5, %10 : vector<8x12xf32>
    %c0_2 = arith.constant 0 : index
    %c2 = arith.constant 2 : index
    %12 = vector.load %arg2[%c0_2, %c2] : memref<8x3xi32, #tpu.memory_space<vmem>>, vector<8x1xi32>
    %13 = vector.broadcast %12 : vector<8x1xi32> to vector<8x12xi32>
    %14 = arith.cmpi eq, %0, %13 : vector<8x12xi32>
    %15 = arith.extui %14 : vector<8x12xi1> to vector<8x12xi32>
    %16 = arith.sitofp %15 : vector<8x12xi32> to vector<8x12xf32>
    %17 = arith.addf %11, %16 : vector<8x12xf32>
    %cst = arith.constant 1.000000e+00 : f32
    %18 = vector.broadcast %cst : f32 to vector<8x1xf32>
    %c0_3 = arith.constant 0 : index
    %c0_4 = arith.constant 0 : index
    %19 = vector.load %arg1[%c0_3, %c0_4] : memref<8x6xf32, #tpu.memory_space<vmem>>, vector<8x6xf32>
    %20 = tpu.concatenate %19, %17, %18 in 1 : vector<8x6xf32>, vector<8x12xf32>, vector<8x1xf32> -> vector<8x19xf32>
    %c0_5 = arith.constant 0 : index
    %c0_6 = arith.constant 0 : index
    %21 = vector.load %arg3[%c0_5, %c0_6] : memref<19x288xf32, #tpu.memory_space<vmem>>, vector<19x288xf32>
    %cst_7 = arith.constant dense<0.000000e+00> : vector<8x288xf32>
    %22 = tpu.matmul %20, %21, %cst_7 {dimension_numbers = #tpu.dot_dimension_numbers<[1], [0], [0], [1], [0, 0, 1, 1], [], []>} : vector<8x19xf32>, vector<19x288xf32>, vector<8x288xf32> -> vector<8x288xf32>
    %c0_8 = arith.constant 0 : index
    %c0_9 = arith.constant 0 : index
    %23 = vector.load %arg4[%c0_8, %c0_9] : memref<8x288xf32, #tpu.memory_space<vmem>>, vector<8x288xf32>
    tpu.vector_store %arg4[%c0_8, %c0_9], %22 {strides = array<i32>} : memref<8x288xf32, #tpu.memory_space<vmem>>, vector<8x288xf32>,
    return
  }
  func.func @transform_0(%arg0: i32) -> (i32, i32) {
    %c0_i32 = arith.constant 0 : i32
    %c0_i32_0 = arith.constant 0 : i32
    return %arg0, %c0_i32 : i32, i32
  }
  func.func @transform_1(%arg0: i32) -> (i32, i32) {
    %c0_i32 = arith.constant 0 : i32
    %c0_i32_0 = arith.constant 0 : i32
    return %arg0, %c0_i32 : i32, i32
  }
  func.func @transform_2(%arg0: i32) -> (i32, i32) {
    %c0_i32 = arith.constant 0 : i32
    %c0_i32_0 = arith.constant 0 : i32
    %c0_i32_1 = arith.constant 0 : i32
    return %c0_i32, %c0_i32_0 : i32, i32
  }
  func.func @transform_3(%arg0: i32) -> (i32, i32) {
    %c0_i32 = arith.constant 0 : i32
    %c0_i32_0 = arith.constant 0 : i32
    return %arg0, %c0_i32 : i32, i32
  }
}

</mosaic_0001>

<llo_original>
// kernel: custom-call.1
$region0: #{custom-call.1}
  %s0 = inlined_call_operand.vmem [shape: u32[12], index: 0, kind: output, shape index: {}]

// kernel: tokenizer_forward.1
$region0: #{tokenizer_forward.1}
  #allocation0 [shape = 'u32[]', space=smem, size = 0x4, offset = 0x4, fixed_abs, tag = 'smem constant byte address 0x4 - core index']
  #allocation1 [shape = 'u32[144,128]{1,0:T(1,128)}', space=vmem, size = 0x12000, scoped, tag = 'internal scratch']
  %s0 = inlined_call_operand.vmem [shape: f32[16,6], index: 0, kind: input, shape index: {}]
  %s1 = inlined_call_operand.vmem [shape: s32[16,3], index: 1, kind: input, shape index: {}]
  %s2 = inlined_call_operand.vmem [shape: f32[19,288], index: 2, kind: input, shape index: {}]
  %s3 = inlined_call_operand.vmem [shape: f32[16,288], index: 3, kind: output, shape index: {}]
  %s4 = sld [smem:[#allocation0]]
  $region45: #{tokenizer_forward.1} parent=0
    _
  %s6 = ssub.s32 1, %s4
  %s7 = scalar_select 0, %s6, %s4
  loop: start=0, step=1, limit=4
  $region2: #{tokenizer_forward.1} parent=0 // loop_pre_header
    _
  $region3: #{tokenizer_forward.1} parent=0 // loop_header
    %s9 = sphi 0, %s13
    %p10 = scmp.ge.s32.totalorder %s9, 4
    %s19 = sphi 0, %s21
    %s22 = sphi 0, %s19
    %s23 = sphi 0, %s22
    %s39 = sphi 0, %s23
    %s45 = sphi 0, %s47
    %s48 = sphi 0, %s45
    %s49 = sphi 0, %s48
    %s65 = sphi 0, %s49
    %s69 = sphi 0, %s69
    %s71 = sphi 0, %s69
    %s72 = sphi 0, %s71
    %s86 = sphi 0, %s72
    %s92 = sphi 0, %s94
    %s95 = sphi 0, %s92
    %s96 = sphi 0, %s95
    %s112 = sphi 0, %s96
  $region4: #{tokenizer_forward.1} parent=0 // loop_header_branch
    %12 = sbr.rel (%p10) target = $region8
  $region5: #{tokenizer_forward.1} parent=0 // loop_body
    %s14 = ssub.s32 %s9, 1
    %s15 = ssub.s32 %s9, 2
    %s16 = sadd.s32 %s9, 1
    %s17 = ssub.s32 %s9, %s16
    %p18 = scmp.eq.s32.totalorder %s17, 0
    %s20 = sadd.s32 %s19, 1
    %s21 = scalar_select %p18, %s19, %s20
    %p24 = pneg %p18
    %p25 = scmp.eq.s32.totalorder %s9, 1
    %p26 = por %p24, %p25
    %p27 = scmp.ne.s32.totalorder %s19, %s22
    %p28 = scmp.eq.s32.totalorder %s9, 0
    %p29 = por %p27, %p28
    %p30 = scmp.ne.s32.totalorder %s19, %s22
    %p31 = scmp.eq.s32.totalorder %s14, 1
    %p32 = por %p30, %p31
    %p33 = scmp.ne.s32.totalorder %s22, %s23
    %p34 = scmp.eq.s32.totalorder %s14, 0
    %p35 = por %p33, %p34
    %p36 = scmp.ne.s32.totalorder %s22, %s23
    %p37 = scmp.eq.s32.totalorder %s15, 1
    %p38 = por %p36, %p37
    %p40 = scmp.ne.s32.totalorder %s23, %s39
    %p41 = scmp.eq.s32.totalorder %s15, 0
    %p42 = por %p40, %p41
    %s43 = ssub.s32 %s9, %s16
    %p44 = scmp.eq.s32.totalorder %s43, 0
    %s46 = sadd.s32 %s45, 1
    %s47 = scalar_select %p44, %s45, %s46
    %p50 = pneg %p44
    %p51 = scmp.eq.s32.totalorder %s9, 1
    %p52 = por %p50, %p51
    %p53 = scmp.ne.s32.totalorder %s45, %s48
    %p54 = scmp.eq.s32.totalorder %s9, 0
    %p55 = por %p53, %p54
    %p56 = scmp.ne.s32.totalorder %s45, %s48
    %p57 = scmp.eq.s32.totalorder %s14, 1
    %p58 = por %p56, %p57
    %p59 = scmp.ne.s32.totalorder %s48, %s49
    %p60 = scmp.eq.s32.totalorder %s14, 0
    %p61 = por %p59, %p60
    %p62 = scmp.ne.s32.totalorder %s48, %s49
    %p63 = scmp.eq.s32.totalorder %s15, 1
    %p64 = por %p62, %p63
    %p66 = scmp.ne.s32.totalorder %s49, %s65
    %p67 = scmp.eq.s32.totalorder %s15, 0
    %p68 = por %p66, %p67
    %s70 = sadd.s32 %s69, 1
    %p73 = scmp.eq.s32.totalorder %s9, 1
    %p74 = scmp.ne.s32.totalorder %s69, %s71
    %p75 = scmp.eq.s32.totalorder %s9, 0
    %p76 = por %p74, %p75
    %p77 = scmp.ne.s32.totalorder %s69, %s71
    %p78 = scmp.eq.s32.totalorder %s14, 1
    %p79 = por %p77, %p78
    %p80 = scmp.ne.s32.totalorder %s71, %s72
    %p81 = scmp.eq.s32.totalorder %s14, 0
    %p82 = por %p80, %p81
    %p83 = scmp.ne.s32.totalorder %s71, %s72
    %p84 = scmp.eq.s32.totalorder %s15, 1
    %p85 = por %p83, %p84
    %p87 = scmp.ne.s32.totalorder %s72, %s86
    %p88 = scmp.eq.s32.totalorder %s15, 0
    %p89 = por %p87, %p88
    %s90 = ssub.s32 %s9, %s16
    %p91 = scmp.eq.s32.totalorder %s90, 0
    %s93 = sadd.s32 %s92, 1
    %s94 = scalar_select %p91, %s92, %s93
    %p97 = pneg %p91
    %p98 = scmp.eq.s32.totalorder %s9, 1
    %p99 = por %p97, %p98
    %p100 = scmp.ne.s32.totalorder %s92, %s95
    %p101 = scmp.eq.s32.totalorder %s9, 0
    %p102 = por %p100, %p101
    %p103 = scmp.ne.s32.totalorder %s92, %s95
    %p104 = scmp.eq.s32.totalorder %s14, 1
    %p105 = por %p103, %p104
    %p106 = scmp.ne.s32.totalorder %s95, %s96
    %p107 = scmp.eq.s32.totalorder %s14, 0
    %p108 = por %p106, %p107
    %p109 = scmp.ne.s32.totalorder %s95, %s96
    %p110 = scmp.eq.s32.totalorder %s15, 1
    %p111 = por %p109, %p110
    %p113 = scmp.ne.s32.totalorder %s96, %s112
    %p114 = scmp.eq.s32.totalorder %s15, 0
    %p115 = por %p113, %p114
    %p116 = scmp.le.s32.totalorder 1, %s9
    %p117 = scmp.lt.s32.totalorder %s9, 3
    %p118 = pnand %p116, %p117
    %p119 = pneg %p118
    // Predicated region
    $region9: #{tokenizer_forward.1} parent=5 // pred_check
      _
    $region10: #{tokenizer_forward.1} parent=5 // pred_check_branch
      %121 = sbr.rel (%p118) target = $region12
    $region11: #{tokenizer_forward.1} parent=5 // pred_region
      %s122 = ssub.s32 %s9, 1
      // Predicated region
      $region13: #{tokenizer_forward.1} parent=11 // pred_check
        %p123 = pneg %p82
      $region14: #{tokenizer_forward.1} parent=11 // pred_check_branch
        %125 = sbr.rel (%p123) target = $region16
      $region15: #{tokenizer_forward.1} parent=11 // pred_region
        _
      $region16: #{tokenizer_forward.1} parent=11 // pred_fallthru
        _
    $region12: #{tokenizer_forward.1} parent=5 // pred_fallthru
      _
    %p126 = scmp.lt.s32.totalorder %s9, 2
    // Predicated region
    $region17: #{tokenizer_forward.1} parent=5 // pred_check
      %p127 = pneg %p126
    $region18: #{tokenizer_forward.1} parent=5 // pred_check_branch
      %129 = sbr.rel (%p127) target = $region20
    $region19: #{tokenizer_forward.1} parent=5 // pred_region
      // Predicated region
      $region21: #{tokenizer_forward.1} parent=19 // pred_check
        %p130 = pneg %p29
      $region22: #{tokenizer_forward.1} parent=19 // pred_check_branch
        %132 = sbr.rel (%p130) target = $region24
      $region23: #{tokenizer_forward.1} parent=19 // pred_region
        %p133 = scmp.lt.s32.totalorder %s9, 1
        %s134 = scalar_select %p133, %s9, 1
        %s135 = smul.addr %s134, 8
        %s136 = scalar_lea.vmem %s0, %s135
      $region24: #{tokenizer_forward.1} parent=19 // pred_fallthru
        _
      // Predicated region
      $region25: #{tokenizer_forward.1} parent=19 // pred_check
        %p137 = pneg %p55
      $region26: #{tokenizer_forward.1} parent=19 // pred_check_branch
        %139 = sbr.rel (%p137) target = $region28
      $region27: #{tokenizer_forward.1} parent=19 // pred_region
        %p140 = scmp.lt.s32.totalorder %s9, 1
        %s141 = scalar_select %p140, %s9, 1
        %s142 = smul.addr %s141, 8
        %s143 = scalar_lea.vmem %s1, %s142
      $region28: #{tokenizer_forward.1} parent=19 // pred_fallthru
        _
    $region20: #{tokenizer_forward.1} parent=5 // pred_fallthru
      _
    %p144 = scmp.le.s32.totalorder 1, %s9
    %p145 = scmp.lt.s32.totalorder %s9, 3
    %p146 = pnand %p144, %p145
    %p147 = pneg %p146
    // Predicated region
    $region29: #{tokenizer_forward.1} parent=5 // pred_check
      _
    $region30: #{tokenizer_forward.1} parent=5 // pred_check_branch
      %149 = sbr.rel (%p146) target = $region32
    $region31: #{tokenizer_forward.1} parent=5 // pred_region
      %s150 = ssub.s32 %s9, 1
      %p151 = scmp.lt.s32.totalorder %s14, 1
      %s152 = scalar_select %p151, %s14, 1
      %s153 = smul.addr %s152, 8
      %s154 = scalar_lea.vmem %s0, %s153
      %p155 = pneg %p35
      %p156 = pneg %p32
      %p157 = scmp.lt.s32.totalorder %s14, 1
      %s158 = scalar_select %p157, %s14, 1
      %s159 = smul.addr %s158, 8
      %s160 = scalar_lea.vmem %s1, %s159
      %p161 = pneg %p61
      %p162 = pneg %p58
      %p163 = pneg %p82
      %p164 = pneg %p79
      %p165 = pneg %p108
      %p166 = pneg %p105
      %p167 = scmp.lt.s32.totalorder %s14, 1
      %s168 = scalar_select %p167, %s14, 1
      %s169 = smul.addr %s168, 3
      %s170 = smul.addr %s169, 8
      %s171 = scalar_lea.vmem %s3, %s170
      %p172 = scmp.lt.s32.totalorder %s14, 1
      %s173 = scalar_select %p172, %s14, 1
      %s174 = smul.addr %s173, 8
      %s175 = scalar_lea.vmem %s0, %s174
      %p176 = scmp.lt.s32.totalorder %s14, 1
      %s177 = scalar_select %p176, %s14, 1
      %s178 = smul.addr %s177, 8
      %s179 = scalar_lea.vmem %s1, %s178
      %p180 = scmp.lt.s32.totalorder %s14, 1
      %s181 = scalar_select %p180, %s14, 1
      %s182 = smul.addr %s181, 3
      %s183 = smul.addr %s182, 8
      %s184 = scalar_lea.vmem %s3, %s183
      %v185 = vlaneseq
      %v186 = vand.u32 %v185, 127
      %v187 = vld [vmem:[%s179] sm:$0xff]
      %188 = vset.pattern.permute.xlu0 0
      %189 = vperm.xlu0 %188, %v187
      %v190 = vpop.permute.xlu0 %189
      %vm191 = vcmp.eq.s32.totalorder %v186, %v190
      %v192 = vsel %vm191, 1, 0
      %v193 = vcvt.s32.f32 %v192
      %194 = vset.pattern.permute.xlu0 1
      %195 = vperm.xlu0 %194, %v187
      %v196 = vpop.permute.xlu0 %195
      %vm197 = vcmp.eq.s32.totalorder %v186, %v196
      %v198 = vsel %vm197, 1, 0
      %v199 = vcvt.s32.f32 %v198
      %v200 = vadd.f32 %v193, %v199
      %201 = vset.pattern.permute.xlu0 2
      %202 = vperm.xlu0 %201, %v187
      %v203 = vpop.permute.xlu0 %202
      %vm204 = vcmp.eq.s32.totalorder %v186, %v203
      %v205 = vsel %vm204, 1, 0
      %v206 = vcvt.s32.f32 %v205
      %v207 = vadd.f32 %v200, %v206
      %v208 = vld [vmem:[%s175] sm:$0xff]
      %210 = vrot.lane.b32.xlu0 %v207, 6
      %v211 = vpop.permute.xlu0 %210
      %vm213 = vcmask 48128
      %v214 = vsel %vm213, %v208, %v211
      %vm215 = vcmask 146432
      %v216 = vsel %vm215, %v214, 1.0
      %v217 = vld [vmem:[%s2] sm:$0xff]
      %v218 = vld [vmem:[%s2 + $0x8] sm:$0xff]
      %v219 = vld [vmem:[%s2 + $0x10] sm:$0xff]
      %v220 = vld [vmem:[%s2 + $0x18] sm:$0xff]
      %v221 = vld [vmem:[%s2 + $0x20] sm:$0xff]
      %v222 = vld [vmem:[%s2 + $0x28] sm:$0xff]
      %v223 = vld [vmem:[%s2 + $0x30] sm:$0x7]
      %v224 = vld [vmem:[%s2 + $0x38] sm:$0x7]
      %v225 = vld [vmem:[%s2 + $0x40] sm:$0x7]
      %vm226 = vcmask 154624
      %v228 = vsel %vm226, %v216, 0
      %vm230 = vcmask 1042432
      %v232 = vsel %vm230, %v223, 0
      %v235 = vsel %vm230, %v224, 0
      %v238 = vsel %vm230, %v225, 0
      %240 = vmatprep.subr.mxu0 %v218
      %241 = vmatpush1.msra.mxu0 %v217
      %242 = vmatprep.subr.mxu0 %v221
      %243 = vmatpush1.msra.mxu0 %v220
      %244 = vmatprep.subr.mxu0 %v235
      %245 = vmatpush1.msra.mxu0 %v232
      %246 = vmatprep.subr.mxu0 0.0
      %247 = vmatpush1.msra.mxu0 0.0
      %248 = vmatprep.subr.mxu0 0.0
      %249 = vmatpush1.msra.mxu0 0.0
      %250 = vmatprep.subr.mxu0 0.0
      %251 = vmatpush1.msra.mxu0 0.0
      %252 = vmatprep.subr.mxu0 0.0
      %253 = vmatpush1.msra.mxu0 0.0
      %254 = vmatprep.subr.mxu0 0.0
      %255 = vmatpush1.msra.mxu0 0.0
      %256 = vmatprep.subr.mxu0 0.0
      %257 = vmatpush1.msra.mxu0 0.0
      %258 = vmatprep.subr.mxu0 0.0
      %259 = vmatpush1.msra.mxu0 0.0
      %260 = vmatprep.subr.mxu0 0.0
      %261 = vmatpush1.msra.mxu0 0.0
      %262 = vmatprep.subr.mxu0 0.0
      %263 = vmatpush1.msra.mxu0 0.0
      %264 = vmatprep.subr.mxu0 0.0
      %265 = vmatpush1.msra.mxu0 0.0
      %266 = vmatprep.subr.mxu0 0.0
      %267 = vmatpush1.msra.mxu0 0.0
      %268 = vmatprep.subr.mxu0 0.0
      %269 = vmatpush1.msra.mxu0 0.0
      %270 = vmatprep.subr.mxu0 0.0
      %271 = vmatpush1.msra.mxu0 0.0
      %272 = vmatprep.subr.mxu0 0.0
      %273 = vmatpush1.msra.mxu0 0.0
      %274 = vmatprep.subr.mxu0 0.0
      %275 = vmatpush1.msra.mxu0 0.0
      %276 = vmatprep.subr.mxu0 0.0
      %277 = vmatpush1.msra.mxu0 0.0
      %278 = vmatprep.subr.mxu0 0.0
      %279 = vmatpush1.msra.mxu0 0.0
      %280 = vmatprep.subr.mxu0 0.0
      %281 = vmatpush1.msra.mxu0 0.0
      %282 = vmatprep.subr.mxu0 0.0
      %283 = vmatpush1.msra.mxu0 0.0
      %284 = vmatprep.subr.mxu0 0.0
      %285 = vmatpush1.msra.mxu0 0.0
      %286 = vmatprep.subr.mxu0 0.0
      %287 = vmatpush1.msra.mxu0 0.0
      %288 = vmatprep.subr.mxu0 0.0
      %289 = vmatpush1.msra.mxu0 0.0
      %290 = vmatprep.subr.mxu0 0.0
      %291 = vmatpush1.msra.mxu0 0.0
      %292 = vmatprep.subr.mxu0 0.0
      %293 = vmatpush1.msra.mxu0 0.0
      %294 = vmatprep.subr.mxu0 0.0
      %295 = vmatpush1.msra.mxu0 0.0
      %296 = vmatprep.subr.mxu0 0.0
      %297 = vmatpush1.msra.mxu0 0.0
      %298 = vmatprep.subr.mxu0 0.0
      %299 = vmatpush1.msra.mxu0 0.0
      %300 = vmatprep.subr.mxu0 0.0
      %301 = vmatpush1.msra.mxu0 0.0
      %302 = vmatprep.subr.mxu0 0.0
      %303 = vmatpush1.msra.mxu0 0.0
      %304 = vmatprep.mubr.f32.mxu0 0.0
      %305 = vmatmul.mubr.f32.gmra.mrb[0].mxu0 %v228
      %v306 = vpop.f32.mrb[0].mxu0
      %v307 = vadd.f32 0.0, %v306
      %v308 = vpop.f32.mrb[0].mxu0
      %v309 = vadd.f32 0.0, %v308
      %310 = vdwg.mxu0
      %311 = vmatprep.subr.mxu0 0.0
      %312 = vmatpush1.msra.mxu0 %v219
      %313 = vmatprep.subr.mxu0 0.0
      %314 = vmatpush1.msra.mxu0 %v222
      %315 = vmatprep.subr.mxu0 0.0
      %316 = vmatpush1.msra.mxu0 %v238
      %317 = vmatprep.subr.mxu0 0.0
      %318 = vmatpush1.msra.mxu0 0.0
      %319 = vmatprep.subr.mxu0 0.0
      %320 = vmatpush1.msra.mxu0 0.0
      %321 = vmatprep.subr.mxu0 0.0
      %322 = vmatpush1.msra.mxu0 0.0
      %323 = vmatprep.subr.mxu0 0.0
      %324 = vmatpush1.msra.mxu0 0.0
      %325 = vmatprep.subr.mxu0 0.0
      %326 = vmatpush1.msra.mxu0 0.0
      %327 = vmatprep.subr.mxu0 0.0
      %328 = vmatpush1.msra.mxu0 0.0
      %329 = vmatprep.subr.mxu0 0.0
      %330 = vmatpush1.msra.mxu0 0.0
      %331 = vmatprep.subr.mxu0 0.0
      %332 = vmatpush1.msra.mxu0 0.0
      %333 = vmatprep.subr.mxu0 0.0
      %334 = vmatpush1.msra.mxu0 0.0
      %335 = vmatprep.subr.mxu0 0.0
      %336 = vmatpush1.msra.mxu0 0.0
      %337 = vmatprep.subr.mxu0 0.0
      %338 = vmatpush1.msra.mxu0 0.0
      %339 = vmatprep.subr.mxu0 0.0
      %340 = vmatpush1.msra.mxu0 0.0
      %341 = vmatprep.subr.mxu0 0.0
      %342 = vmatpush1.msra.mxu0 0.0
      %343 = vmatprep.subr.mxu0 0.0
      %344 = vmatpush1.msra.mxu0 0.0
      %345 = vmatprep.subr.mxu0 0.0
      %346 = vmatpush1.msra.mxu0 0.0
      %347 = vmatprep.subr.mxu0 0.0
      %348 = vmatpush1.msra.mxu0 0.0
      %349 = vmatprep.subr.mxu0 0.0
      %350 = vmatpush1.msra.mxu0 0.0
      %351 = vmatprep.subr.mxu0 0.0
      %352 = vmatpush1.msra.mxu0 0.0
      %353 = vmatprep.subr.mxu0 0.0
      %354 = vmatpush1.msra.mxu0 0.0
      %355 = vmatprep.subr.mxu0 0.0
      %356 = vmatpush1.msra.mxu0 0.0
      %357 = vmatprep.subr.mxu0 0.0
      %358 = vmatpush1.msra.mxu0 0.0
      %359 = vmatprep.subr.mxu0 0.0
      %360 = vmatpush1.msra.mxu0 0.0
      %361 = vmatprep.subr.mxu0 0.0
      %362 = vmatpush1.msra.mxu0 0.0
      %363 = vmatprep.subr.mxu0 0.0
      %364 = vmatpush1.msra.mxu0 0.0
      %365 = vmatprep.subr.mxu0 0.0
      %366 = vmatpush1.msra.mxu0 0.0
      %367 = vmatprep.subr.mxu0 0.0
      %368 = vmatpush1.msra.mxu0 0.0
      %369 = vmatprep.subr.mxu0 0.0
      %370 = vmatpush1.msra.mxu0 0.0
      %371 = vmatprep.subr.mxu0 0.0
      %372 = vmatpush1.msra.mxu0 0.0
      %373 = vmatprep.subr.mxu0 0.0
      %374 = vmatpush1.msra.mxu0 0.0
      %375 = vmatprep.mubr.f32.mxu0 0.0
      %376 = vmatmul.mubr.f32.gmra.mrb[0].mxu0 %v228
      %v377 = vpop.f32.mrb[0].mxu0
      %v378 = vadd.f32 0.0, %v377
      %v379 = vpop.f32.mrb[0].mxu0
      %380 = vdwg.mxu0
      %381 = vst [vmem:[%s184] sm:$0xff] %v307
      %382 = vst [vmem:[%s184 + $0x8] sm:$0xff] %v309
      %vm383 = vcmask 261120
      %384 = vst.msk [vmem:[%s184 + $0x10] sm:$0xff] %vm383, %v378
      %p385 = scmp.lt.s32.totalorder %s14, 1
      %s386 = scalar_select %p385, %s14, 1
      %s387 = smul.addr %s386, 3
      %s388 = smul.addr %s387, 8
      %s389 = scalar_lea.vmem %s3, %s388
      // Predicated region
      $region33: #{tokenizer_forward.1} parent=31 // pred_check
        %p390 = pneg %p105
      $region34: #{tokenizer_forward.1} parent=31 // pred_check_branch
        %392 = sbr.rel (%p390) target = $region36
      $region35: #{tokenizer_forward.1} parent=31 // pred_region
        _
      $region36: #{tokenizer_forward.1} parent=31 // pred_fallthru
        _
    $region32: #{tokenizer_forward.1} parent=5 // pred_fallthru
      _
    %p393 = scmp.le.s32.totalorder 2, %s9
    // Predicated region
    $region37: #{tokenizer_forward.1} parent=5 // pred_check
      %p394 = pneg %p393
    $region38: #{tokenizer_forward.1} parent=5 // pred_check_branch
      %396 = sbr.rel (%p394) target = $region40
    $region39: #{tokenizer_forward.1} parent=5 // pred_region
      %s397 = ssub.s32 %s9, 2
      // Predicated region
      $region41: #{tokenizer_forward.1} parent=39 // pred_check
        %p398 = pneg %p111
      $region42: #{tokenizer_forward.1} parent=39 // pred_check_branch
        %400 = sbr.rel (%p398) target = $region44
      $region43: #{tokenizer_forward.1} parent=39 // pred_region
        %p401 = scmp.lt.s32.totalorder %s15, 1
        %s402 = scalar_select %p401, %s15, 1
        %s403 = smul.addr %s402, 3
        %s404 = smul.addr %s403, 8
        %s405 = scalar_lea.vmem %s3, %s404
      $region44: #{tokenizer_forward.1} parent=39 // pred_fallthru
        _
    $region40: #{tokenizer_forward.1} parent=5 // pred_fallthru
      _
  $region6: #{tokenizer_forward.1} parent=0 // loop_footer
    %s13 = sadd.s32 1, %s9
  $region7: #{tokenizer_forward.1} parent=0 // loop_footer_branch
    %8 = sbr.rel target = $region3
  $region8: #{tokenizer_forward.1} parent=0 // loop_exit
    _

</llo_original>
